<compile_context>
chip_gen: v7x
topology: tpu7x:2x2x1
jax: 0.10.0
libtpu: 0.0.40
codegen_flags: <defaults>
</compile_context>

<pallas_src>
import functools

import jax
import jax.numpy as jnp
from jax import lax
from jax.experimental import pallas as pl
from jax.experimental.pallas import tpu as pltpu

N_LAYERS = 4


def simple_model_kernel(x_ref, y_ref, w_ref, b_ref, loss_ref, h_ref, acc_ref):
    l = pl.program_id(0)          # layer index
    k = pl.program_id(1)          # reduction (input-feature) tile
    nl = pl.num_programs(0)
    nk_g = pl.num_programs(1)

    nk = h_ref.shape[1]           # static tile counts (== nk_g)
    tk = h_ref.shape[3]

    in_slot = l % 2
    out_slot = (l + 1) % 2

    # Fresh layer: start the f32 accumulator from the bias.
    @pl.when(k == 0)
    def _():
        acc_ref[...] = jnp.broadcast_to(b_ref[0], acc_ref.shape)

    # Layer 0 reads the streamed x tile directly; later layers read the bf16 ping-pong
    # activation scratch (no staging copy of x).
    h_blk = jnp.where(l == 0, x_ref[0], h_ref[in_slot, k])          # (B, tk) bf16

    # Streamed MXU matmul: (B, tk) bf16 @ (tk, H) bf16 -> (B, H) f32 accumulation.
    acc_ref[...] += jnp.dot(h_blk, w_ref[0], preferred_element_type=jnp.float32)

    # Layer finished (not the last one): commit bf16 activations into the other slot.
    @pl.when((k == nk_g - 1) & (l < nl - 1))
    def _():
        acc = acc_ref[...].astype(h_ref.dtype)                      # (B, H) bf16
        for j in range(nk):                                         # static unroll
            h_ref[out_slot, j] = acc[:, j * tk:(j + 1) * tk]

    # Cross-entropy epilogue: once, on the resident (B, H) f32 final-layer logits.
    @pl.when((k == nk_g - 1) & (l == nl - 1))
    def _():
        logits = acc_ref[...]                                       # (B, H) f32
        m = jnp.max(logits, axis=-1, keepdims=True)                 # (B, 1)
        lse = m + jnp.log(jnp.sum(jnp.exp(logits - m), axis=-1, keepdims=True))
        class_ids = lax.broadcasted_iota(jnp.int32, logits.shape, 1)
        picked = jnp.where(class_ids == y_ref[...], logits, 0.0)    # one hit per row
        tgt = jnp.sum(picked, axis=-1, keepdims=True)               # (B, 1)
        loss_ref[...] = jnp.mean(lse - tgt).reshape(1, 1)


def _physical_vmem_bytes():
    try:
        return int(pltpu.get_tpu_info().vmem_capacity_bytes)
    except Exception:
        return 64 * 1024 * 1024       # conservative fallback (v7x per-TC VMEM)


def _vmem_need_bytes(B, H, tk, nk, wbytes):
    return (2 * tk * H * wbytes           # double-buffered weight block
            + 2 * B * tk * wbytes         # double-buffered x block
            + 2 * H * 4                   # double-buffered bias block
            + 2 * nk * B * tk * wbytes    # ping-pong activation scratch (bf16)
            + B * H * 4                   # f32 accumulator / final logits
            + (2 << 20))                  # compiler-internal headroom


def _auto_tile(B, H, wbytes, vmem_phys):
    """Largest k-tile whose double-buffered weight block stays <= 1/2 of physical VMEM."""
    for tk in (4096, 2048, 1024, 512, 256, 128):
        if tk > H or H % tk:
            continue
        if (2 * tk * H * wbytes <= vmem_phys // 2 and
                _vmem_need_bytes(B, H, tk, H // tk, wbytes) <= (vmem_phys * 85) // 100):
            return tk
    return 128


def pack_params(params, w_dtype=jnp.bfloat16):
    """ONE-TIME parameter prep -- call once, outside the per-step hot path.

    PyTorch Linear computes x @ W.T + b, so transpose each weight to [in, out] and stack
    layers into a [L, H, H] slab.  Row blocks of this layout are contiguous in HBM, so
    every streamed (tk, H) weight tile is a single contiguous DMA."""
    ws = jnp.stack([params[f"w{i}"].T for i in range(1, N_LAYERS + 1)]).astype(w_dtype)
    bs = jnp.stack([params[f"b{i}"].reshape(1, -1)
                    for i in range(1, N_LAYERS + 1)]).astype(jnp.float32)
    return ws, bs


def simple_model_loss(x, y, ws, bs, *, tk=None):
    """x: [B, H] f32, y: [B] int labels, (ws, bs): output of pack_params (pre-packed)."""
    B, H = x.shape
    assert ws.shape == (N_LAYERS, H, H) and bs.shape == (N_LAYERS, 1, H), (ws.shape, bs.shape)
    assert H % 128 == 0, H
    w_dtype = ws.dtype
    wbytes = jnp.dtype(w_dtype).itemsize

    vmem_phys = _physical_vmem_bytes()
    if tk is None:
        tk = _auto_tile(B, H, wbytes, vmem_phys)
    assert H % tk == 0 and tk % 128 == 0, (H, tk)
    nk = H // tk

    # Tiny per-call prep (B*H elements only): tile/cast activations, int32 labels.
    x_tiled = x.reshape(B, nk, tk).transpose(1, 0, 2).astype(w_dtype)   # (nk, B, tk)
    y2d = y.astype(jnp.int32).reshape(B, 1)

    grid = (N_LAYERS, nk)   # (layer, reduction tile) -- reduction innermost.

    in_specs = [
        pl.BlockSpec((1, B, tk), lambda l, k: (k, 0, 0)),    # x tile (layer-0 input)
        pl.BlockSpec((B, 1), lambda l, k: (0, 0)),           # labels (tiny, resident)
        pl.BlockSpec((1, tk, H), lambda l, k: (l, k, 0)),    # contiguous weight row-block
        pl.BlockSpec((1, 1, H), lambda l, k: (l, 0, 0)),     # bias row
    ]
    out_specs = pl.BlockSpec((1, 1), lambda l, k: (0, 0))

    scratch_shapes = [
        pltpu.VMEM((2, nk, B, tk), w_dtype),    # ping-pong activations (bf16)
        pltpu.VMEM((B, H), jnp.float32),        # f32 accumulator / final logits
    ]

    vmem_need = _vmem_need_bytes(B, H, tk, nk, wbytes)
    vmem_limit = int(min(max(int(vmem_need * 1.25), 32 * 1024 * 1024), vmem_phys))

    cost = pl.CostEstimate(
        flops=2 * N_LAYERS * B * H * H,
        transcendentals=B * H,
        bytes_accessed=N_LAYERS * H * H * wbytes + 2 * B * H * 4 + N_LAYERS * H * 4,
    )

    loss = pl.pallas_call(
        simple_model_kernel,
        out_shape=jax.ShapeDtypeStruct((1, 1), jnp.float32),
        grid=grid,
        in_specs=in_specs,
        out_specs=out_specs,
        scratch_shapes=scratch_shapes,
        compiler_params=pltpu.CompilerParams(
            # Both axes carry state through the VMEM scratch -> keep sequential.
            dimension_semantics=("arbitrary", "arbitrary"),
            vmem_limit_bytes=vmem_limit),
        cost_estimate=cost,
    )(x_tiled, y2d, ws, bs)
    return loss[0, 0]


def init_params(key, hidden_dim):
    """Deterministic init matching PyTorch Linear's U(-1/sqrt(in), 1/sqrt(in))."""
    params = {}
    bound = 1.0 / jnp.sqrt(jnp.float32(hidden_dim))
    for i in range(1, N_LAYERS + 1):
        key, kw, kb = jax.random.split(key, 3)
        params[f"w{i}"] = jax.random.uniform(
            kw, (hidden_dim, hidden_dim), jnp.float32, -bound, bound)
        params[f"b{i}"] = jax.random.uniform(
            kb, (hidden_dim,), jnp.float32, -bound, bound)
    return params


def reference_loss(x, y, params, w_dtype=None):
    """Pure-JAX reference. w_dtype=bf16 mirrors the kernel's weight/activation quantization."""
    h = x
    for i in range(1, N_LAYERS + 1):
        w = params[f"w{i}"].T
        if w_dtype is not None:
            w = w.astype(w_dtype)
            h = h.astype(w_dtype)
        h = jnp.dot(h, w, preferred_element_type=jnp.float32) + params[f"b{i}"]
    m = jnp.max(h, axis=-1, keepdims=True)
    lse = (m + jnp.log(jnp.sum(jnp.exp(h - m), axis=-1, keepdims=True)))[:, 0]
    tgt = jnp.take_along_axis(h, y[:, None].astype(jnp.int32), axis=1)[:, 0]
    return jnp.mean(lse - tgt)


if __name__ == "__main__":
    # Small shapes consistent with the module (the real model uses hidden_dim = 4096).
    batch, hidden = 8, 512

    key = jax.random.PRNGKey(0)
    key, kx, ky = jax.random.split(key, 3)
    x = jax.random.normal(kx, (batch, hidden), dtype=jnp.float32)
    y = jax.random.randint(ky, (batch,), 0, hidden, dtype=jnp.int32)
    params = init_params(key, hidden)

    # One-time weight packing, hoisted out of the per-step path (perf-review item #1).
    ws, bs = jax.block_until_ready(pack_params(params))

    # tk=128 exercises the full (layer, k) = (4, 4) streaming grid at toy size; at the
    # real hidden_dim=4096 leave tk=None for the generation-aware auto-pick.
    loss_fn = jax.jit(functools.partial(simple_model_loss, tk=128))
    loss = jax.block_until_ready(loss_fn(x, y, ws, bs))

    # Tight check vs a bf16-weight/activation-matched reference (same numerics as kernel).
    ref_bf16 = reference_loss(x, y, params, w_dtype=jnp.bfloat16)
    assert jnp.allclose(loss, ref_bf16, rtol=1e-3, atol=1e-3), (loss, ref_bf16)
    # Loose sanity check vs the full-f32 reference (bf16 quantization shift).
    ref_f32 = reference_loss(x, y, params)
    assert jnp.allclose(loss, ref_f32, rtol=5e-2, atol=5e-2), (loss, ref_f32)

    print("KERNEL_OK")
</pallas_src>

<mosaic_0001>
module attributes {stable_mosaic.version = 11 : i64} {
  func.func @simple_model_kernel(%arg0: i32, %arg1: i32, %arg2: memref<1x8x128xbf16, #tpu.memory_space<vmem>>, %arg3: memref<8x1xi32, #tpu.memory_space<vmem>>, %arg4: memref<1x128x512xbf16, #tpu.memory_space<vmem>>, %arg5: memref<1x1x512xf32, #tpu.memory_space<vmem>>, %arg6: memref<1x1xf32, #tpu.memory_space<vmem>>, %arg7: memref<2x4x8x128xbf16, #tpu.memory_space<vmem>>, %arg8: memref<8x512xf32, #tpu.memory_space<vmem>>) attributes {dimension_semantics = [#tpu.dimension_semantics<arbitrary>, #tpu.dimension_semantics<arbitrary>], iteration_bounds = array<i64: 4, 4>, scalar_prefetch = 0 : i64, scratch_operands = 2 : i64, tpu.core_type = #tpu.core_type<tc>, window_params = [{transform_indices = @transform_0, window_bounds = array<i64: 1, 8, 128>}, {pipeline_mode = #tpu.pipeline_mode<synchronous>, transform_indices = @transform_1, window_bounds = array<i64: 8, 1>}, {transform_indices = @transform_2, window_bounds = array<i64: 1, 128, 512>}, {transform_indices = @transform_3, window_bounds = array<i64: 1, 1, 512>}, {pipeline_mode = #tpu.pipeline_mode<synchronous>, transform_indices = @transform_4, window_bounds = array<i64: 1, 1>}]} {
    %c2_i32 = arith.constant 2 : i32
    %c0_i32 = arith.constant 0 : i32
    %0 = arith.cmpi eq, %c2_i32, %c0_i32 : i32
    %c1_i32 = arith.constant 1 : i32
    %1 = arith.select %0, %c1_i32, %c2_i32 : i32
    %2 = arith.remsi %arg0, %1 : i32
    %c0_i32_0 = arith.constant 0 : i32
    %3 = arith.cmpi ne, %2, %c0_i32_0 : i32
    %c0_i32_1 = arith.constant 0 : i32
    %4 = arith.cmpi slt, %2, %c0_i32_1 : i32
    %c0_i32_2 = arith.constant 0 : i32
    %5 = arith.cmpi slt, %1, %c0_i32_2 : i32
    %6 = arith.xori %4, %5 : i1
    %7 = arith.andi %6, %3 : i1
    %8 = arith.addi %2, %1 : i32
    %9 = arith.select %7, %8, %2 : i32
    %c1_i32_3 = arith.constant 1 : i32
    %10 = arith.addi %arg0, %c1_i32_3 : i32
    %c2_i32_4 = arith.constant 2 : i32
    %c0_i32_5 = arith.constant 0 : i32
    %11 = arith.cmpi eq, %c2_i32_4, %c0_i32_5 : i32
    %c1_i32_6 = arith.constant 1 : i32
    %12 = arith.select %11, %c1_i32_6, %c2_i32_4 : i32
    %13 = arith.remsi %10, %12 : i32
    %c0_i32_7 = arith.constant 0 : i32
    %14 = arith.cmpi ne, %13, %c0_i32_7 : i32
    %c0_i32_8 = arith.constant 0 : i32
    %15 = arith.cmpi slt, %13, %c0_i32_8 : i32
    %c0_i32_9 = arith.constant 0 : i32
    %16 = arith.cmpi slt, %12, %c0_i32_9 : i32
    %17 = arith.xori %15, %16 : i1
    %18 = arith.andi %17, %14 : i1
    %19 = arith.addi %13, %12 : i32
    %20 = arith.select %18, %19, %13 : i32
    %c0_i32_10 = arith.constant 0 : i32
    %21 = arith.cmpi eq, %arg1, %c0_i32_10 : i32
    %22 = arith.extui %21 : i1 to i32
    %c0_i32_11 = arith.constant 0 : i32
    %23 = arith.cmpi ne, %22, %c0_i32_11 : i32
    scf.if %23 {
      %c0_29 = arith.constant 0 : index
      %c0_30 = arith.constant 0 : index
      %c0_31 = arith.constant 0 : index
      %48 = vector.load %arg5[%c0_29, %c0_30, %c0_31] : memref<1x1x512xf32, #tpu.memory_space<vmem>>, vector<1x1x512xf32>
      %49 = vector.shape_cast %48 : vector<1x1x512xf32> to vector<1x512xf32>
      %50 = vector.shape_cast %49 : vector<1x512xf32> to vector<1x512xf32>
      %51 = vector.broadcast %50 : vector<1x512xf32> to vector<8x512xf32>
      %c0_32 = arith.constant 0 : index
      %c0_33 = arith.constant 0 : index
      %52 = vector.load %arg8[%c0_32, %c0_33] : memref<8x512xf32, #tpu.memory_space<vmem>>, vector<8x512xf32>
      tpu.vector_store %arg8[%c0_32, %c0_33], %51 {strides = array<i32>} : memref<8x512xf32, #tpu.memory_space<vmem>>, vector<8x512xf32>,
    } else {
    }
    %c0_i32_12 = arith.constant 0 : i32
    %24 = arith.cmpi eq, %arg0, %c0_i32_12 : i32
    %c0 = arith.constant 0 : index
    %c0_13 = arith.constant 0 : index
    %c0_14 = arith.constant 0 : index
    %25 = vector.load %arg2[%c0, %c0_13, %c0_14] : memref<1x8x128xbf16, #tpu.memory_space<vmem>>, vector<1x8x128xbf16>
    %26 = vector.shape_cast %25 : vector<1x8x128xbf16> to vector<8x128xbf16>
    %27 = arith.index_cast %9 : i32 to index
    %28 = arith.index_cast %arg1 : i32 to index
    %c0_15 = arith.constant 0 : index
    %c0_16 = arith.constant 0 : index
    %29 = vector.load %arg7[%27, %28, %c0_15, %c0_16] : memref<2x4x8x128xbf16, #tpu.memory_space<vmem>>, vector<1x1x8x128xbf16>
    %30 = vector.shape_cast %29 : vector<1x1x8x128xbf16> to vector<8x128xbf16>
    %31 = arith.select %24, %26, %30 : vector<8x128xbf16>
    %c0_17 = arith.constant 0 : index
    %c0_18 = arith.constant 0 : index
    %32 = vector.load %arg8[%c0_17, %c0_18] : memref<8x512xf32, #tpu.memory_space<vmem>>, vector<8x512xf32>
    %c0_19 = arith.constant 0 : index
    %c0_20 = arith.constant 0 : index
    %c0_21 = arith.constant 0 : index
    %33 = vector.load %arg4[%c0_19, %c0_20, %c0_21] : memref<1x128x512xbf16, #tpu.memory_space<vmem>>, vector<1x128x512xbf16>
    %34 = vector.shape_cast %33 : vector<1x128x512xbf16> to vector<128x512xbf16>
    %cst = arith.constant dense<0.000000e+00> : vector<8x512xf32>
    %35 = tpu.matmul %31, %34, %cst {dimension_numbers = #tpu.dot_dimension_numbers<[1], [0], [0], [1], [0, 0, 1, 1], [], []>} : vector<8x128xbf16>, vector<128x512xbf16>, vector<8x512xf32> -> vector<8x512xf32>
    %36 = arith.addf %32, %35 : vector<8x512xf32>
    %c0_22 = arith.constant 0 : index
    %c0_23 = arith.constant 0 : index
    %37 = vector.load %arg8[%c0_22, %c0_23] : memref<8x512xf32, #tpu.memory_space<vmem>>, vector<8x512xf32>
    tpu.vector_store %arg8[%c0_22, %c0_23], %36 {strides = array<i32>} : memref<8x512xf32, #tpu.memory_space<vmem>>, vector<8x512xf32>,
    %c3_i32 = arith.constant 3 : i32
    %38 = arith.cmpi eq, %arg1, %c3_i32 : i32
    %c3_i32_24 = arith.constant 3 : i32
    %39 = arith.cmpi slt, %arg0, %c3_i32_24 : i32
    %40 = arith.andi %38, %39 : i1
    %41 = arith.extui %40 : i1 to i32
    %c0_i32_25 = arith.constant 0 : i32
    %42 = arith.cmpi ne, %41, %c0_i32_25 : i32
    scf.if %42 {
      %c0_29 = arith.constant 0 : index
      %c0_30 = arith.constant 0 : index
      %48 = vector.load %arg8[%c0_29, %c0_30] : memref<8x512xf32, #tpu.memory_space<vmem>>, vector<8x512xf32>
      %49 = arith.truncf %48 : vector<8x512xf32> to vector<8x512xbf16>
      %50 = vector.extract_strided_slice %49 {offsets = [0, 0], sizes = [8, 128], strides = [1, 1]} : vector<8x512xbf16> to vector<8x128xbf16>
      %51 = arith.index_cast %20 : i32 to index
      %c0_31 = arith.constant 0 : index
      %c0_32 = arith.constant 0 : index
      %c0_33 = arith.constant 0 : index
      %52 = vector.load %arg7[%51, %c0_31, %c0_32, %c0_33] : memref<2x4x8x128xbf16, #tpu.memory_space<vmem>>, vector<1x1x8x128xbf16>
      %53 = vector.shape_cast %52 : vector<1x1x8x128xbf16> to vector<8x128xbf16>
      %54 = vector.shape_cast %50 : vector<8x128xbf16> to vector<1x1x8x128xbf16>
      tpu.vector_store %arg7[%51, %c0_31, %c0_32, %c0_33], %54 {strides = array<i32>} : memref<2x4x8x128xbf16, #tpu.memory_space<vmem>>, vector<1x1x8x128xbf16>,
      %55 = vector.extract_strided_slice %49 {offsets = [0, 128], sizes = [8, 128], strides = [1, 1]} : vector<8x512xbf16> to vector<8x128xbf16>
      %56 = arith.index_cast %20 : i32 to index
      %c1 = arith.constant 1 : index
      %c0_34 = arith.constant 0 : index
      %c0_35 = arith.constant 0 : index
      %57 = vector.load %arg7[%56, %c1, %c0_34, %c0_35] : memref<2x4x8x128xbf16, #tpu.memory_space<vmem>>, vector<1x1x8x128xbf16>
      %58 = vector.shape_cast %57 : vector<1x1x8x128xbf16> to vector<8x128xbf16>
      %59 = vector.shape_cast %55 : vector<8x128xbf16> to vector<1x1x8x128xbf16>
      tpu.vector_store %arg7[%56, %c1, %c0_34, %c0_35], %59 {strides = array<i32>} : memref<2x4x8x128xbf16, #tpu.memory_space<vmem>>, vector<1x1x8x128xbf16>,
      %60 = vector.extract_strided_slice %49 {offsets = [0, 256], sizes = [8, 128], strides = [1, 1]} : vector<8x512xbf16> to vector<8x128xbf16>
      %61 = arith.index_cast %20 : i32 to index
      %c2 = arith.constant 2 : index
      %c0_36 = arith.constant 0 : index
      %c0_37 = arith.constant 0 : index
      %62 = vector.load %arg7[%61, %c2, %c0_36, %c0_37] : memref<2x4x8x128xbf16, #tpu.memory_space<vmem>>, vector<1x1x8x128xbf16>
      %63 = vector.shape_cast %62 : vector<1x1x8x128xbf16> to vector<8x128xbf16>
      %64 = vector.shape_cast %60 : vector<8x128xbf16> to vector<1x1x8x128xbf16>
      tpu.vector_store %arg7[%61, %c2, %c0_36, %c0_37], %64 {strides = array<i32>} : memref<2x4x8x128xbf16, #tpu.memory_space<vmem>>, vector<1x1x8x128xbf16>,
      %65 = vector.extract_strided_slice %49 {offsets = [0, 384], sizes = [8, 128], strides = [1, 1]} : vector<8x512xbf16> to vector<8x128xbf16>
      %66 = arith.index_cast %20 : i32 to index
      %c3 = arith.constant 3 : index
      %c0_38 = arith.constant 0 : index
      %c0_39 = arith.constant 0 : index
      %67 = vector.load %arg7[%66, %c3, %c0_38, %c0_39] : memref<2x4x8x128xbf16, #tpu.memory_space<vmem>>, vector<1x1x8x128xbf16>
      %68 = vector.shape_cast %67 : vector<1x1x8x128xbf16> to vector<8x128xbf16>
      %69 = vector.shape_cast %65 : vector<8x128xbf16> to vector<1x1x8x128xbf16>
      tpu.vector_store %arg7[%66, %c3, %c0_38, %c0_39], %69 {strides = array<i32>} : memref<2x4x8x128xbf16, #tpu.memory_space<vmem>>, vector<1x1x8x128xbf16>,
    } else {
    }
    %c3_i32_26 = arith.constant 3 : i32
    %43 = arith.cmpi eq, %arg1, %c3_i32_26 : i32
    %c3_i32_27 = arith.constant 3 : i32
    %44 = arith.cmpi eq, %arg0, %c3_i32_27 : i32
    %45 = arith.andi %43, %44 : i1
    %46 = arith.extui %45 : i1 to i32
    %c0_i32_28 = arith.constant 0 : i32
    %47 = arith.cmpi ne, %46, %c0_i32_28 : i32
    scf.if %47 {
      %c0_29 = arith.constant 0 : index
      %c0_30 = arith.constant 0 : index
      %48 = vector.load %arg8[%c0_29, %c0_30] : memref<8x512xf32, #tpu.memory_space<vmem>>, vector<8x512xf32>
      %cst_31 = arith.constant dense<0xFF800000> : vector<8xf32>
      %49 = vector.multi_reduction <maximumf>, %48, %cst_31 [1] : vector<8x512xf32> to vector<8xf32>
      %50 = vector.shape_cast %49 : vector<8xf32> to vector<8x1xf32>
      %51 = vector.broadcast %50 : vector<8x1xf32> to vector<8x512xf32>
      %52 = arith.subf %48, %51 : vector<8x512xf32>
      %53 = math.exp %52 : vector<8x512xf32>
      %cst_32 = arith.constant dense<0.000000e+00> : vector<8xf32>
      %54 = vector.multi_reduction <add>, %53, %cst_32 [1] : vector<8x512xf32> to vector<8xf32>
      %55 = vector.shape_cast %54 : vector<8xf32> to vector<8x1xf32>
      %56 = math.log %55 : vector<8x1xf32>
      %57 = arith.addf %50, %56 : vector<8x1xf32>
      %58 = tpu.iota {dimensions = array<i32: 1>} : vector<8x512xi32>
      %c0_33 = arith.constant 0 : index
      %c0_34 = arith.constant 0 : index
      %59 = vector.load %arg3[%c0_33, %c0_34] : memref<8x1xi32, #tpu.memory_space<vmem>>, vector<8x1xi32>
      %60 = vector.broadcast %59 : vector<8x1xi32> to vector<8x512xi32>
      %61 = arith.cmpi eq, %58, %60 : vector<8x512xi32>
      %cst_35 = arith.constant 0.000000e+00 : f32
      %62 = vector.broadcast %cst_35 : f32 to vector<8x512xf32>
      %63 = arith.select %61, %48, %62 : vector<8x512xi1>, vector<8x512xf32>
      %cst_36 = arith.constant dense<0.000000e+00> : vector<8xf32>
      %64 = vector.multi_reduction <add>, %63, %cst_36 [1] : vector<8x512xf32> to vector<8xf32>
      %65 = vector.shape_cast %64 : vector<8xf32> to vector<8x1xf32>
      %66 = arith.subf %57, %65 : vector<8x1xf32>
      %67 = vector.shape_cast %66 : vector<8x1xf32> to vector<1x8x1xf32>
      %cst_37 = arith.constant dense<0.000000e+00> : vector<1xf32>
      %68 = vector.multi_reduction <add>, %67, %cst_37 [1, 2] : vector<1x8x1xf32> to vector<1xf32>
      %69 = vector.shape_cast %68 : vector<1xf32> to vector<1x1x1xf32>
      %70 = vector.extract %69[0, 0, 0] : f32 from vector<1x1x1xf32>
      %cst_38 = arith.constant 8.000000e+00 : f32
      %71 = arith.divf %70, %cst_38 : f32
      %72 = vector.broadcast %71 : f32 to vector<1x1xf32>
      %c0_39 = arith.constant 0 : index
      %c0_40 = arith.constant 0 : index
      %73 = vector.load %arg6[%c0_39, %c0_40] : memref<1x1xf32, #tpu.memory_space<vmem>>, vector<1x1xf32>
      tpu.vector_store %arg6[%c0_39, %c0_40], %72 {strides = array<i32>} : memref<1x1xf32, #tpu.memory_space<vmem>>, vector<1x1xf32>,
    } else {
    }
    return
  }
  func.func @transform_0(%arg0: i32, %arg1: i32) -> (i32, i32, i32) {
    %c0_i32 = arith.constant 0 : i32
    %c0_i32_0 = arith.constant 0 : i32
    %c0_i32_1 = arith.constant 0 : i32
    return %arg1, %c0_i32, %c0_i32_0 : i32, i32, i32
  }
  func.func @transform_1(%arg0: i32, %arg1: i32) -> (i32, i32) {
    %c0_i32 = arith.constant 0 : i32
    %c0_i32_0 = arith.constant 0 : i32
    %c0_i32_1 = arith.constant 0 : i32
    return %c0_i32, %c0_i32_0 : i32, i32
  }
  func.func @transform_2(%arg0: i32, %arg1: i32) -> (i32, i32, i32) {
    %c0_i32 = arith.constant 0 : i32
    %c0_i32_0 = arith.constant 0 : i32
    return %arg0, %arg1, %c0_i32 : i32, i32, i32
  }
  func.func @transform_3(%arg0: i32, %arg1: i32) -> (i32, i32, i32) {
    %c0_i32 = arith.constant 0 : i32
    %c0_i32_0 = arith.constant 0 : i32
    %c0_i32_1 = arith.constant 0 : i32
    return %arg0, %c0_i32, %c0_i32_0 : i32, i32, i32
  }
  func.func @transform_4(%arg0: i32, %arg1: i32) -> (i32, i32) {
    %c0_i32 = arith.constant 0 : i32
    %c0_i32_0 = arith.constant 0 : i32
    %c0_i32_1 = arith.constant 0 : i32
    return %c0_i32, %c0_i32_0 : i32, i32
  }
}

</mosaic_0001>

<llo_original>
// kernel: simple_model_loss.1
$region0: #{simple_model_loss.1}
  #allocation0 [shape = 'u32[]', space=smem, size = 0x4, offset = 0x4, fixed_abs, tag = 'smem constant byte address 0x4 - core index']
  #allocation1 [shape = 'u32[144,128]{1,0:T(1,128)}', space=vmem, size = 0x12000, scoped, tag = 'internal scratch']
  #allocation2 [shape = 'bf16[2,4,8,128]{3,2,1,0:T(8,128)(2,1)}', space=vmem, size = 0x4000, scoped, tag = 'scratch operand']
  #allocation3 [shape = 'f32[8,512]{1,0:T(8,128)}', space=vmem, size = 0x4000, scoped, tag = 'scratch operand']
  %s0 = inlined_call_operand.vmem [shape: bf16[4,8,128], index: 0, kind: input, shape index: {}]
  %s1 = inlined_call_operand.vmem [shape: s32[8,1], index: 1, kind: input, shape index: {}]
  %s2 = inlined_call_operand.hbm [shape: bf16[4,512,512], index: 2, kind: input, shape index: {}]
  %s3 = inlined_call_operand.hbm [shape: f32[4,1,512], index: 3, kind: input, shape index: {}]
  %s4 = inlined_call_operand.hbm [shape: f32[1,1], index: 4, kind: output, shape index: {}]
  %s5 = sld [smem:[#allocation0]]
  $region69: #{simple_model_loss.1} parent=0
    _
  %s7 = ssub.s32 1, %s5
  %s8 = scalar_select 0, %s7, %s5
  $region1: #{simple_model_loss.1} parent=0
    #allocation4 [shape = 'u8[262144]{0}', space=vmem, size = 0x40000, scoped, tag = 'input window, operand 2']
    #allocation5 [shape = 's32[2]{0}', space=sflag, size = 0x8, scoped, tag = 'scoped memory for simple_model_loss.1']
    #allocation6 [shape = 's32[2]{0}', space=sflag, size = 0x8, scoped, tag = 'scoped memory for simple_model_loss.1']
    #allocation7 [shape = 'u8[4096]{0}', space=vmem, size = 0x1000, scoped, tag = 'input window, operand 3']
    #allocation8 [shape = 's32[2]{0}', space=sflag, size = 0x8, scoped, tag = 'scoped memory for simple_model_loss.1']
    #allocation9 [shape = 'u8[512]{0}', space=vmem, size = 0x400, scoped, tag = 'output window, operand 0, single buffered']
    %9 = vsyncpa [#allocation5], 0
    %s10 = scalar_lea.sflag [#allocation5], 1
    %11 = vsyncpa %s10, 0
    %12 = vsyncpa [#allocation8], 0
    %s13 = scalar_lea.sflag [#allocation8], 1
    %14 = vsyncpa %s13, 0
    %15 = vsyncpa [#allocation6], 0
    loop: start=0, step=1, limit=18
    $region2: #{simple_model_loss.1} parent=1 // loop_pre_header
      _
    $region3: #{simple_model_loss.1} parent=1 // loop_header
      %s17 = sphi 0, %s21
      %p18 = scmp.ge.s32.totalorder %s17, 18
      %s24 = sphi 0, %s36
      %s25 = sphi 0, %s32
      %s26 = sphi 0, %s24
      %s27 = sphi 0, %s25
      %s28 = sphi 0, %s26
      %s29 = sphi 0, %s27
      %s39 = sphi 0, %s41
      %s42 = sphi 0, %s39
      %s43 = sphi 0, %s42
      %s59 = sphi 0, %s43
      %s63 = sphi 0, %s63
      %s65 = sphi 0, %s63
      %s66 = sphi 0, %s65
      %s80 = sphi 0, %s66
      %s88 = sphi 0, %s90
      %s91 = sphi 0, %s88
      %s92 = sphi 0, %s91
      %s108 = sphi 0, %s92
      %s114 = sphi 0, %s116
      %s117 = sphi 0, %s114
      %s118 = sphi 0, %s117
      %s134 = sphi 0, %s118
      %s138 = sphi 0, %s138
      %s140 = sphi 0, %s138
      %s141 = sphi 0, %s140
      %s155 = sphi 0, %s141
    $region4: #{simple_model_loss.1} parent=1 // loop_header_branch
      %20 = sbr.rel (%p18) target = $region8
    $region5: #{simple_model_loss.1} parent=1 // loop_body
      %s22 = ssub.s32 %s17, 1
      %s23 = ssub.s32 %s17, 2
      %s30 = sadd.s32 1, %s25
      %p31 = scmp.ge.s32.totalorder %s30, 4
      %s32 = scalar_select %p31, 0, %s30
      %s33 = sadd.s32 1, %s24
      %s34 = scalar_select %p31, %s33, %s24
      %p35 = scmp.ge.s32.totalorder %s34, 4
      %s36 = scalar_select %p35, 0, %s34
      %s37 = ssub.s32 %s25, %s32
      %p38 = scmp.eq.s32.totalorder %s37, 0
      %s40 = sadd.s32 %s39, 1
      %s41 = scalar_select %p38, %s39, %s40
      %p44 = pneg %p38
      %p45 = scmp.eq.s32.totalorder %s17, 15
      %p46 = por %p44, %p45
      %p47 = scmp.ne.s32.totalorder %s39, %s42
      %p48 = scmp.eq.s32.totalorder %s17, 0
      %p49 = por %p47, %p48
      %p50 = scmp.ne.s32.totalorder %s39, %s42
      %p51 = scmp.eq.s32.totalorder %s22, 15
      %p52 = por %p50, %p51
      %p53 = scmp.ne.s32.totalorder %s42, %s43
      %p54 = scmp.eq.s32.totalorder %s22, 0
      %p55 = por %p53, %p54
      %p56 = scmp.ne.s32.totalorder %s42, %s43
      %p57 = scmp.eq.s32.totalorder %s23, 15
      %p58 = por %p56, %p57
      %p60 = scmp.ne.s32.totalorder %s43, %s59
      %p61 = scmp.eq.s32.totalorder %s23, 0
      %p62 = por %p60, %p61
      %s64 = sadd.s32 %s63, 1
      %p67 = scmp.eq.s32.totalorder %s17, 15
      %p68 = scmp.ne.s32.totalorder %s63, %s65
      %p69 = scmp.eq.s32.totalorder %s17, 0
      %p70 = por %p68, %p69
      %p71 = scmp.ne.s32.totalorder %s63, %s65
      %p72 = scmp.eq.s32.totalorder %s22, 15
      %p73 = por %p71, %p72
      %p74 = scmp.ne.s32.totalorder %s65, %s66
      %p75 = scmp.eq.s32.totalorder %s22, 0
      %p76 = por %p74, %p75
      %p77 = scmp.ne.s32.totalorder %s65, %s66
      %p78 = scmp.eq.s32.totalorder %s23, 15
      %p79 = por %p77, %p78
      %p81 = scmp.ne.s32.totalorder %s66, %s80
      %p82 = scmp.eq.s32.totalorder %s23, 0
      %p83 = por %p81, %p82
      %s84 = ssub.s32 %s24, %s36
      %s85 = ssub.s32 %s25, %s32
      %s86 = sor.u32 %s84, %s85
      %p87 = scmp.eq.s32.totalorder %s86, 0
      %s89 = sadd.s32 %s88, 1
      %s90 = scalar_select %p87, %s88, %s89
      %p93 = pneg %p87
      %p94 = scmp.eq.s32.totalorder %s17, 15
      %p95 = por %p93, %p94
      %p96 = scmp.ne.s32.totalorder %s88, %s91
      %p97 = scmp.eq.s32.totalorder %s17, 0
      %p98 = por %p96, %p97
      %p99 = scmp.ne.s32.totalorder %s88, %s91
      %p100 = scmp.eq.s32.totalorder %s22, 15
      %p101 = por %p99, %p100
      %p102 = scmp.ne.s32.totalorder %s91, %s92
      %p103 = scmp.eq.s32.totalorder %s22, 0
      %p104 = por %p102, %p103
      %p105 = scmp.ne.s32.totalorder %s91, %s92
      %p106 = scmp.eq.s32.totalorder %s23, 15
      %p107 = por %p105, %p106
      %p109 = scmp.ne.s32.totalorder %s92, %s108
      %p110 = scmp.eq.s32.totalorder %s23, 0
      %p111 = por %p109, %p110
      %s112 = ssub.s32 %s24, %s36
      %p113 = scmp.eq.s32.totalorder %s112, 0
      %s115 = sadd.s32 %s114, 1
      %s116 = scalar_select %p113, %s114, %s115
      %p119 = pneg %p113
      %p120 = scmp.eq.s32.totalorder %s17, 15
      %p121 = por %p119, %p120
      %p122 = scmp.ne.s32.totalorder %s114, %s117
      %p123 = scmp.eq.s32.totalorder %s17, 0
      %p124 = por %p122, %p123
      %p125 = scmp.ne.s32.totalorder %s114, %s117
      %p126 = scmp.eq.s32.totalorder %s22, 15
      %p127 = por %p125, %p126
      %p128 = scmp.ne.s32.totalorder %s117, %s118
      %p129 = scmp.eq.s32.totalorder %s22, 0
      %p130 = por %p128, %p129
      %p131 = scmp.ne.s32.totalorder %s117, %s118
      %p132 = scmp.eq.s32.totalorder %s23, 15
      %p133 = por %p131, %p132
      %p135 = scmp.ne.s32.totalorder %s118, %s134
      %p136 = scmp.eq.s32.totalorder %s23, 0
      %p137 = por %p135, %p136
      %s139 = sadd.s32 %s138, 1
      %p142 = scmp.eq.s32.totalorder %s17, 15
      %p143 = scmp.ne.s32.totalorder %s138, %s140
      %p144 = scmp.eq.s32.totalorder %s17, 0
      %p145 = por %p143, %p144
      %p146 = scmp.ne.s32.totalorder %s138, %s140
      %p147 = scmp.eq.s32.totalorder %s22, 15
      %p148 = por %p146, %p147
      %p149 = scmp.ne.s32.totalorder %s140, %s141
      %p150 = scmp.eq.s32.totalorder %s22, 0
      %p151 = por %p149, %p150
      %p152 = scmp.ne.s32.totalorder %s140, %s141
      %p153 = scmp.eq.s32.totalorder %s23, 15
      %p154 = por %p152, %p153
      %p156 = scmp.ne.s32.totalorder %s141, %s155
      %p157 = scmp.eq.s32.totalorder %s23, 0
      %p158 = por %p156, %p157
      %p159 = scmp.le.s32.totalorder 1, %s17
      %p160 = scmp.lt.s32.totalorder %s17, 17
      %p161 = pnand %p159, %p160
      %p162 = pneg %p161
      // Predicated region
      $region9: #{simple_model_loss.1} parent=5 // pred_check
        _
      $region10: #{simple_model_loss.1} parent=5 // pred_check_branch
        %164 = sbr.rel (%p161) target = $region12
      $region11: #{simple_model_loss.1} parent=5 // pred_region
        %s165 = ssub.s32 %s17, 1
        // Predicated region
        $region13: #{simple_model_loss.1} parent=11 // pred_check
          %p166 = pneg %p76
        $region14: #{simple_model_loss.1} parent=11 // pred_check_branch
          %168 = sbr.rel (%p166) target = $region16
        $region15: #{simple_model_loss.1} parent=11 // pred_region
          _
        $region16: #{simple_model_loss.1} parent=11 // pred_fallthru
          _
      $region12: #{simple_model_loss.1} parent=5 // pred_fallthru
        _
      %p169 = scmp.lt.s32.totalorder %s17, 16
      // Predicated region
      $region17: #{simple_model_loss.1} parent=5 // pred_check
        %p170 = pneg %p169
      $region18: #{simple_model_loss.1} parent=5 // pred_check_branch
        %172 = sbr.rel (%p170) target = $region20
      $region19: #{simple_model_loss.1} parent=5 // pred_region
        // Predicated region
        $region21: #{simple_model_loss.1} parent=19 // pred_check
          %p173 = pneg %p49
        $region22: #{simple_model_loss.1} parent=19 // pred_check_branch
          %175 = sbr.rel (%p173) target = $region24
        $region23: #{simple_model_loss.1} parent=19 // pred_region
          %p176 = scmp.lt.s32.totalorder %s25, 3
          %s177 = scalar_select %p176, %s25, 3
          %s178 = smul.addr %s177, 4
          %s179 = scalar_lea.vmem %s0, %s178
        $region24: #{simple_model_loss.1} parent=19 // pred_fallthru
          _
        // Predicated region
        $region25: #{simple_model_loss.1} parent=19 // pred_check
          %p180 = pneg %p98
        $region26: #{simple_model_loss.1} parent=19 // pred_check_branch
          %182 = sbr.rel (%p180) target = $region28
        $region27: #{simple_model_loss.1} parent=19 // pred_region
          %s183 = sand.u32 %s88, 1
          %s184 = scalar_lea.sflag [#allocation5], %s183
          %s185 = sand.u32 %s88, 1
          %s186 = smul.addr %s185, 256
          %s187 = scalar_lea.vmem [#allocation4], %s186
          %s188 = smul.u32 16, %s25
          %s190 = ssub.s32 4096, 4096
          %191 = vsyncadd %s184, %s190
          %s192 = smul.addr %s188, 4
          %s193 = smul.addr %s24, 256
          %s194 = sadd.s32 %s192, %s193
          %s195 = smul.addr %s194, 64
          %s196 = scalar_lea.hbm %s2, %s195
          %s197 = sshll.u32 %s187, 4
          %s198 = int_to_ptr.vmem [resolvable:$true] %s197
          %203 = dma.hbm_to_vmem [thread:$0]  %s196, 4096, %s198, %s184, 256, 256, 16
        $region28: #{simple_model_loss.1} parent=19 // pred_fallthru
          _
        // Predicated region
        $region29: #{simple_model_loss.1} parent=19 // pred_check
          %p204 = pneg %p124
        $region30: #{simple_model_loss.1} parent=19 // pred_check_branch
          %206 = sbr.rel (%p204) target = $region32
        $region31: #{simple_model_loss.1} parent=19 // pred_region
          %s207 = sand.u32 %s114, 1
          %s208 = scalar_lea.sflag [#allocation8], %s207
          %s209 = sand.u32 %s114, 1
          %s210 = smul.addr %s209, 4
          %s211 = scalar_lea.vmem [#allocation7], %s210
          %s213 = ssub.s32 64, 64
          %214 = vsyncadd %s208, %s213
          %s215 = smul.addr %s24, 4
          %s216 = smul.addr %s215, 16
          %s217 = scalar_lea.hbm %s3, %s216
          %s219 = sshll.u32 %s211, 4
          %s220 = int_to_ptr.vmem [resolvable:$true] %s219
          %222 = dma.hbm_to_vmem [thread:$0]  %s217, 64, %s220, %s208
        $region32: #{simple_model_loss.1} parent=19 // pred_fallthru
          _
      $region20: #{simple_model_loss.1} parent=5 // pred_fallthru
        _
      %p223 = scmp.le.s32.totalorder 1, %s17
      %p224 = scmp.lt.s32.totalorder %s17, 17
      %p225 = pnand %p223, %p224
      %p226 = pneg %p225
      // Predicated region
      $region33: #{simple_model_loss.1} parent=5 // pred_check
        _
      $region34: #{simple_model_loss.1} parent=5 // pred_check_branch
        %228 = sbr.rel (%p225) target = $region36
      $region35: #{simple_model_loss.1} parent=5 // pred_region
        %s229 = ssub.s32 %s17, 1
        %s230 = sand.u32 %s91, 1
        %s231 = scalar_lea.sflag [#allocation5], %s230
        %s232 = sand.u32 %s91, 1
        %s233 = smul.addr %s232, 256
        %s234 = scalar_lea.vmem [#allocation4], %s233
        // Predicated region
        $region37: #{simple_model_loss.1} parent=35 // pred_check
          %p235 = pneg %p104
        $region38: #{simple_model_loss.1} parent=35 // pred_check_branch
          %237 = sbr.rel (%p235) target = $region40
        $region39: #{simple_model_loss.1} parent=35 // pred_region
          %238 = dma.done %s231, 4096
        $region40: #{simple_model_loss.1} parent=35 // pred_fallthru
          _
        %s239 = sand.u32 %s117, 1
        %s240 = scalar_lea.sflag [#allocation8], %s239
        %s241 = sand.u32 %s117, 1
        %s242 = smul.addr %s241, 4
        %s243 = scalar_lea.vmem [#allocation7], %s242
        // Predicated region
        $region41: #{simple_model_loss.1} parent=35 // pred_check
          %p244 = pneg %p130
        $region42: #{simple_model_loss.1} parent=35 // pred_check_branch
          %246 = sbr.rel (%p244) target = $region44
        $region43: #{simple_model_loss.1} parent=35 // pred_region
          %247 = dma.done %s240, 64
        $region44: #{simple_model_loss.1} parent=35 // pred_fallthru
          _
        %p248 = scmp.lt.s32.totalorder %s27, 3
        %s249 = scalar_select %p248, %s27, 3
        %s250 = smul.addr %s249, 4
        %s251 = scalar_lea.vmem %s0, %s250
        %p252 = pneg %p55
        %p253 = pneg %p52
        %p254 = pneg %p76
        %p255 = pneg %p73
        %s256 = sand.u32 %s91, 1
        %s257 = scalar_lea.sflag [#allocation5], %s256
        %s258 = sand.u32 %s91, 1
        %s259 = smul.addr %s258, 256
        %s260 = scalar_lea.vmem [#allocation4], %s259
        %p261 = pneg %p104
        %p262 = pneg %p101
        %s263 = sand.u32 %s117, 1
        %s264 = scalar_lea.sflag [#allocation8], %s263
        %s265 = sand.u32 %s117, 1
        %s266 = smul.addr %s265, 4
        %s267 = scalar_lea.vmem [#allocation7], %s266
        %p268 = pneg %p130
        %p269 = pneg %p127
        %p270 = pneg %p151
        %p271 = pneg %p148
        %p272 = scmp.lt.s32.totalorder %s27, 3
        %s273 = scalar_select %p272, %s27, 3
        %s274 = smul.addr %s273, 4
        %s275 = scalar_lea.vmem %s0, %s274
        %s276 = smul.u32 16, %s27
        %p278 = scmp.lt.s32.totalorder %s26, 0
        %s279 = ssub.s32 0, %s26
        %s280 = scalar_select %p278, %s279, %s26
        %s281 = sand.u32 %s280, 1
        %s282 = ssub.s32 0, %s281
        %s283 = scalar_select %p278, %s282, %s281
        %p284 = scmp.ne.s32.totalorder %s283, 0
        %p285 = scmp.lt.s32.totalorder %s283, 0
        %p286 = pnand %p285, %p284
        %p287 = pneg %p286
        %s288 = sadd.s32 %s283, 2
        %s289 = scalar_select %p287, %s288, %s283
        %s290 = sadd.s32 %s26, 1
        %p291 = scmp.lt.s32.totalorder %s290, 0
        %s292 = ssub.s32 0, %s290
        %s293 = scalar_select %p291, %s292, %s290
        %s294 = sand.u32 %s293, 1
        %s295 = ssub.s32 0, %s294
        %s296 = scalar_select %p291, %s295, %s294
        %p297 = scmp.ne.s32.totalorder %s296, 0
        %p298 = scmp.lt.s32.totalorder %s296, 0
        %p299 = pnand %p298, %p297
        %p300 = pneg %p299
        %s301 = sadd.s32 %s296, 2
        %s302 = scalar_select %p300, %s301, %s296
        %p303 = scmp.eq.s32.totalorder %s27, 0
        // Predicated region
        $region45: #{simple_model_loss.1} parent=35 // pred_check
          %p304 = pneg %p303
        $region46: #{simple_model_loss.1} parent=35 // pred_check_branch
          %306 = sbr.rel (%p304) target = $region48
        $region47: #{simple_model_loss.1} parent=35 // pred_region
          %v307 = vld [vmem:[%s243] sm:$0xf]
          %v309 = vlaneseq
          %v310 = vshrl.u32 %v309, 7
          %v311 = vsub.s32 0, %v310
          %v312 = vrot.slane %v307, %v311
          %v313 = vlaneseq
          %v314 = vshrl.u32 %v313, 7
          %v315 = vsub.s32 1, %v314
          %v316 = vrot.slane %v307, %v315
          %v317 = vlaneseq
          %v318 = vshrl.u32 %v317, 7
          %v319 = vsub.s32 2, %v318
          %v320 = vrot.slane %v307, %v319
          %v321 = vlaneseq
          %v322 = vshrl.u32 %v321, 7
          %v323 = vsub.s32 3, %v322
          %v324 = vrot.slane %v307, %v323
          %329 = vst [vmem:[#allocation3] sm:$0xff] %v312
          %330 = vst [vmem:[#allocation3 + $0x8] sm:$0xff] %v316
          %331 = vst [vmem:[#allocation3 + $0x10] sm:$0xff] %v320
          %332 = vst [vmem:[#allocation3 + $0x18] sm:$0xff] %v324
        $region48: #{simple_model_loss.1} parent=35 // pred_fallthru
          _
        %p333 = scmp.eq.s32.totalorder %s26, 0
        %v334 = vld [vmem:[%s275] sm:$0xf]
        %s335 = smul.u32 %s289, 4
        %s336 = sadd.s32 %s27, %s335
        %s337 = smul.addr %s336, 4
        %s338 = scalar_lea.vmem [#allocation2], %s337
        %v339 = vld [vmem:[%s338] sm:$0xf]
        %s340 = scalar_select %p333, 1, 0
        %v341 = vstv %s340
        %vm342 = vcmp.eq.s32.totalorder %v341, 1
        %v343 = vsel %vm342, %v334, %v339
        %v344 = vld [vmem:[#allocation3] sm:$0xff]
        %v345 = vld [vmem:[#allocation3 + $0x8] sm:$0xff]
        %v346 = vld [vmem:[#allocation3 + $0x10] sm:$0xff]
        %v347 = vld [vmem:[#allocation3 + $0x18] sm:$0xff]
        %v348 = vld [vmem:[%s234] sm:$0xff]
        %v349 = vld [vmem:[%s234 + $0x8] sm:$0xff]
        %v350 = vld [vmem:[%s234 + $0x10] sm:$0xff]
        %v351 = vld [vmem:[%s234 + $0x18] sm:$0xff]
        %v352 = vld [vmem:[%s234 + $0x20] sm:$0xff]
        %v353 = vld [vmem:[%s234 + $0x28] sm:$0xff]
        %v354 = vld [vmem:[%s234 + $0x30] sm:$0xff]
        %v355 = vld [vmem:[%s234 + $0x38] sm:$0xff]
        %v356 = vld [vmem:[%s234 + $0x40] sm:$0xff]
        %v357 = vld [vmem:[%s234 + $0x48] sm:$0xff]
        %v358 = vld [vmem:[%s234 + $0x50] sm:$0xff]
        %v359 = vld [vmem:[%s234 + $0x58] sm:$0xff]
        %v360 = vld [vmem:[%s234 + $0x60] sm:$0xff]
        %v361 = vld [vmem:[%s234 + $0x68] sm:$0xff]
        %v362 = vld [vmem:[%s234 + $0x70] sm:$0xff]
        %v363 = vld [vmem:[%s234 + $0x78] sm:$0xff]
        %v364 = vld [vmem:[%s234 + $0x80] sm:$0xff]
        %v365 = vld [vmem:[%s234 + $0x88] sm:$0xff]
        %v366 = vld [vmem:[%s234 + $0x90] sm:$0xff]
        %v367 = vld [vmem:[%s234 + $0x98] sm:$0xff]
        %v368 = vld [vmem:[%s234 + $0xa0] sm:$0xff]
        %v369 = vld [vmem:[%s234 + $0xa8] sm:$0xff]
        %v370 = vld [vmem:[%s234 + $0xb0] sm:$0xff]
        %v371 = vld [vmem:[%s234 + $0xb8] sm:$0xff]
        %v372 = vld [vmem:[%s234 + $0xc0] sm:$0xff]
        %v373 = vld [vmem:[%s234 + $0xc8] sm:$0xff]
        %v374 = vld [vmem:[%s234 + $0xd0] sm:$0xff]
        %v375 = vld [vmem:[%s234 + $0xd8] sm:$0xff]
        %v376 = vld [vmem:[%s234 + $0xe0] sm:$0xff]
        %v377 = vld [vmem:[%s234 + $0xe8] sm:$0xff]
        %v378 = vld [vmem:[%s234 + $0xf0] sm:$0xff]
        %v379 = vld [vmem:[%s234 + $0xf8] sm:$0xff]
        %v412 = vunpack.c.l.b16 %v348
        %v413 = vunpack.c.h.b16 %v348
        %v414 = vunpack.c.l.b16 %v349
        %v415 = vunpack.c.h.b16 %v349
        %v416 = vunpack.c.l.b16 %v350
        %v417 = vunpack.c.h.b16 %v350
        %v418 = vunpack.c.l.b16 %v351
        %v419 = vunpack.c.h.b16 %v351
        %v420 = vunpack.c.l.b16 %v352
        %v421 = vunpack.c.h.b16 %v352
        %v422 = vunpack.c.l.b16 %v353
        %v423 = vunpack.c.h.b16 %v353
        %v424 = vunpack.c.l.b16 %v354
        %v425 = vunpack.c.h.b16 %v354
        %v426 = vunpack.c.l.b16 %v355
        %v427 = vunpack.c.h.b16 %v355
        %v428 = vunpack.c.l.b16 %v356
        %v429 = vunpack.c.h.b16 %v356
        %v430 = vunpack.c.l.b16 %v357
        %v431 = vunpack.c.h.b16 %v357
        %v432 = vunpack.c.l.b16 %v358
        %v433 = vunpack.c.h.b16 %v358
        %v434 = vunpack.c.l.b16 %v359
        %v435 = vunpack.c.h.b16 %v359
        %v436 = vunpack.c.l.b16 %v360
        %v437 = vunpack.c.h.b16 %v360
        %v438 = vunpack.c.l.b16 %v361
        %v439 = vunpack.c.h.b16 %v361
        %v440 = vunpack.c.l.b16 %v362
        %v441 = vunpack.c.h.b16 %v362
        %v442 = vunpack.c.l.b16 %v363
        %v443 = vunpack.c.h.b16 %v363
        %v444 = vunpack.c.l.b16 %v364
        %v445 = vunpack.c.h.b16 %v364
        %v446 = vunpack.c.l.b16 %v365
        %v447 = vunpack.c.h.b16 %v365
        %v448 = vunpack.c.l.b16 %v366
        %v449 = vunpack.c.h.b16 %v366
        %v450 = vunpack.c.l.b16 %v367
        %v451 = vunpack.c.h.b16 %v367
        %v452 = vunpack.c.l.b16 %v368
        %v453 = vunpack.c.h.b16 %v368
        %v454 = vunpack.c.l.b16 %v369
        %v455 = vunpack.c.h.b16 %v369
        %v456 = vunpack.c.l.b16 %v370
        %v457 = vunpack.c.h.b16 %v370
        %v458 = vunpack.c.l.b16 %v371
        %v459 = vunpack.c.h.b16 %v371
        %v460 = vunpack.c.l.b16 %v372
        %v461 = vunpack.c.h.b16 %v372
        %v462 = vunpack.c.l.b16 %v373
        %v463 = vunpack.c.h.b16 %v373
        %v464 = vunpack.c.l.b16 %v374
        %v465 = vunpack.c.h.b16 %v374
        %v466 = vunpack.c.l.b16 %v375
        %v467 = vunpack.c.h.b16 %v375
        %v468 = vunpack.c.l.b16 %v376
        %v469 = vunpack.c.h.b16 %v376
        %v470 = vunpack.c.l.b16 %v377
        %v471 = vunpack.c.h.b16 %v377
        %v472 = vunpack.c.l.b16 %v378
        %v473 = vunpack.c.h.b16 %v378
        %v474 = vunpack.c.l.b16 %v379
        %v475 = vunpack.c.h.b16 %v379
        %v476 = vpack.c.b16 %v416, %v412
        %v477 = vpack.c.b16 %v417, %v413
        %v478 = vpack.c.b16 %v418, %v414
        %v479 = vpack.c.b16 %v419, %v415
        %v480 = vpack.c.b16 %v424, %v420
        %v481 = vpack.c.b16 %v425, %v421
        %v482 = vpack.c.b16 %v426, %v422
        %v483 = vpack.c.b16 %v427, %v423
        %v484 = vpack.c.b16 %v432, %v428
        %v485 = vpack.c.b16 %v433, %v429
        %v486 = vpack.c.b16 %v434, %v430
        %v487 = vpack.c.b16 %v435, %v431
        %v488 = vpack.c.b16 %v440, %v436
        %v489 = vpack.c.b16 %v441, %v437
        %v490 = vpack.c.b16 %v442, %v438
        %v491 = vpack.c.b16 %v443, %v439
        %v492 = vpack.c.b16 %v448, %v444
        %v493 = vpack.c.b16 %v449, %v445
        %v494 = vpack.c.b16 %v450, %v446
        %v495 = vpack.c.b16 %v451, %v447
        %v496 = vpack.c.b16 %v456, %v452
        %v497 = vpack.c.b16 %v457, %v453
        %v498 = vpack.c.b16 %v458, %v454
        %v499 = vpack.c.b16 %v459, %v455
        %v500 = vpack.c.b16 %v464, %v460
        %v501 = vpack.c.b16 %v465, %v461
        %v502 = vpack.c.b16 %v466, %v462
        %v503 = vpack.c.b16 %v467, %v463
        %v504 = vpack.c.b16 %v472, %v468
        %v505 = vpack.c.b16 %v473, %v469
        %v506 = vpack.c.b16 %v474, %v470
        %v507 = vpack.c.b16 %v475, %v471
        %540 = vmatprep.subr.bf16.mxu0 %v477
        %541 = vmatpush1.bf16.msra.mxu0 %v476
        %542 = vmatprep.subr.bf16.mxu0 %v481
        %543 = vmatpush1.bf16.msra.mxu0 %v480
        %544 = vmatprep.subr.bf16.mxu0 %v485
        %545 = vmatpush1.bf16.msra.mxu0 %v484
        %546 = vmatprep.subr.bf16.mxu0 %v489
        %547 = vmatpush1.bf16.msra.mxu0 %v488
        %548 = vmatprep.subr.bf16.mxu0 %v493
        %549 = vmatpush1.bf16.msra.mxu0 %v492
        %550 = vmatprep.subr.bf16.mxu0 %v497
        %551 = vmatpush1.bf16.msra.mxu0 %v496
        %552 = vmatprep.subr.bf16.mxu0 %v501
        %553 = vmatpush1.bf16.msra.mxu0 %v500
        %554 = vmatprep.subr.bf16.mxu0 %v505
        %555 = vmatpush1.bf16.msra.mxu0 %v504
        %556 = vmatprep.subr.bf16.mxu0 0
        %557 = vmatpush1.bf16.msra.mxu0 0
        %558 = vmatprep.subr.bf16.mxu0 0
        %559 = vmatpush1.bf16.msra.mxu0 0
        %560 = vmatprep.subr.bf16.mxu0 0
        %561 = vmatpush1.bf16.msra.mxu0 0
        %562 = vmatprep.subr.bf16.mxu0 0
        %563 = vmatpush1.bf16.msra.mxu0 0
        %564 = vmatprep.subr.bf16.mxu0 0
        %565 = vmatpush1.bf16.msra.mxu0 0
        %566 = vmatprep.subr.bf16.mxu0 0
        %567 = vmatpush1.bf16.msra.mxu0 0
        %568 = vmatprep.subr.bf16.mxu0 0
        %569 = vmatpush1.bf16.msra.mxu0 0
        %570 = vmatprep.subr.bf16.mxu0 0
        %571 = vmatpush1.bf16.msra.mxu0 0
        %572 = vmatprep.mubr.bf16.mxu0 0
        %573 = vmatmul.mubr.bf16.gmra.mrb[0].mxu0 %v343
        %v574 = vpop.f32.mrb[0].mxu0
        %v575 = vadd.f32 0.0, %v574
        %v576 = vpop.f32.mrb[0].mxu0
        %v577 = vadd.f32 0.0, %v576
        %v578 = vpop.f32.mrb[0].mxu0
        %v579 = vpop.f32.mrb[0].mxu0
        %580 = vdwg.mxu0
        %581 = vmatprep.subr.bf16.mxu0 %v479
        %582 = vmatpush1.bf16.msra.mxu0 %v478
        %583 = vmatprep.subr.bf16.mxu0 %v483
        %584 = vmatpush1.bf16.msra.mxu0 %v482
        %585 = vmatprep.subr.bf16.mxu0 %v487
        %586 = vmatpush1.bf16.msra.mxu0 %v486
        %587 = vmatprep.subr.bf16.mxu0 %v491
        %588 = vmatpush1.bf16.msra.mxu0 %v490
        %589 = vmatprep.subr.bf16.mxu0 %v495
        %590 = vmatpush1.bf16.msra.mxu0 %v494
        %591 = vmatprep.subr.bf16.mxu0 %v499
        %592 = vmatpush1.bf16.msra.mxu0 %v498
        %593 = vmatprep.subr.bf16.mxu0 %v503
        %594 = vmatpush1.bf16.msra.mxu0 %v502
        %595 = vmatprep.subr.bf16.mxu0 %v507
        %596 = vmatpush1.bf16.msra.mxu0 %v506
        %597 = vmatprep.subr.bf16.mxu0 0
        %598 = vmatpush1.bf16.msra.mxu0 0
        %599 = vmatprep.subr.bf16.mxu0 0
        %600 = vmatpush1.bf16.msra.mxu0 0
        %601 = vmatprep.subr.bf16.mxu0 0
        %602 = vmatpush1.bf16.msra.mxu0 0
        %603 = vmatprep.subr.bf16.mxu0 0
        %604 = vmatpush1.bf16.msra.mxu0 0
        %605 = vmatprep.subr.bf16.mxu0 0
        %606 = vmatpush1.bf16.msra.mxu0 0
        %607 = vmatprep.subr.bf16.mxu0 0
        %608 = vmatpush1.bf16.msra.mxu0 0
        %609 = vmatprep.subr.bf16.mxu0 0
        %610 = vmatpush1.bf16.msra.mxu0 0
        %611 = vmatprep.subr.bf16.mxu0 0
        %612 = vmatpush1.bf16.msra.mxu0 0
        %613 = vmatprep.mubr.bf16.mxu0 0
        %614 = vmatmul.mubr.bf16.gmra.mrb[0].mxu0 %v343
        %v615 = vpop.f32.mrb[0].mxu0
        %v616 = vadd.f32 0.0, %v615
        %v617 = vpop.f32.mrb[0].mxu0
        %v618 = vadd.f32 0.0, %v617
        %v619 = vpop.f32.mrb[0].mxu0
        %v620 = vpop.f32.mrb[0].mxu0
        %621 = vdwg.mxu0
        %v622 = vadd.f32 %v344, %v575
        %v623 = vadd.f32 %v345, %v577
        %v624 = vadd.f32 %v346, %v616
        %v625 = vadd.f32 %v347, %v618
        %626 = vst [vmem:[#allocation3] sm:$0xff] %v622
        %627 = vst [vmem:[#allocation3 + $0x8] sm:$0xff] %v623
        %628 = vst [vmem:[#allocation3 + $0x10] sm:$0xff] %v624
        %629 = vst [vmem:[#allocation3 + $0x18] sm:$0xff] %v625
        %p630 = scmp.eq.s32.totalorder %s27, 3
        %p631 = scmp.lt.s32.totalorder %s26, 3
        %p632 = pnand %p630, %p631
        %p633 = pneg %p632
        // Predicated region
        $region49: #{simple_model_loss.1} parent=35 // pred_check
          _
        $region50: #{simple_model_loss.1} parent=35 // pred_check_branch
          %635 = sbr.rel (%p632) target = $region52
        $region51: #{simple_model_loss.1} parent=35 // pred_region
          %v636 = vld [vmem:[#allocation3] sm:$0xff]
          %v637 = vld [vmem:[#allocation3 + $0x8] sm:$0xff]
          %v638 = vld [vmem:[#allocation3 + $0x10] sm:$0xff]
          %v639 = vld [vmem:[#allocation3 + $0x18] sm:$0xff]
          %v640 = vpack.c.bf16 %v636, %v636
          %v641 = vpack.c.bf16 %v637, %v637
          %v642 = vpack.c.bf16 %v638, %v638
          %v643 = vpack.c.bf16 %v639, %v639
          %s644 = smul.u32 %s302, 4
          %s645 = smul.addr %s644, 4
          %s646 = scalar_lea.vmem [#allocation2], %s645
          %647 = vst [vmem:[%s646] sm:$0xf] %v640
          %s648 = sadd.s32 1, %s644
          %s649 = smul.addr %s648, 4
          %s650 = scalar_lea.vmem [#allocation2], %s649
          %651 = vst [vmem:[%s650] sm:$0xf] %v641
          %s652 = sadd.s32 2, %s644
          %s653 = smul.addr %s652, 4
          %s654 = scalar_lea.vmem [#allocation2], %s653
          %655 = vst [vmem:[%s654] sm:$0xf] %v642
          %s656 = sadd.s32 3, %s644
          %s657 = smul.addr %s656, 4
          %s658 = scalar_lea.vmem [#allocation2], %s657
          %659 = vst [vmem:[%s658] sm:$0xf] %v643
        $region52: #{simple_model_loss.1} parent=35 // pred_fallthru
          _
        %p660 = scmp.eq.s32.totalorder %s26, 3
        %p661 = pnand %p630, %p660
        %p662 = pneg %p661
        // Predicated region
        $region53: #{simple_model_loss.1} parent=35 // pred_check
          _
        $region54: #{simple_model_loss.1} parent=35 // pred_check_branch
          %664 = sbr.rel (%p661) target = $region56
        $region55: #{simple_model_loss.1} parent=35 // pred_region
          %v665 = vld [vmem:[#allocation3] sm:$0xff]
          %v666 = vld [vmem:[#allocation3 + $0x8] sm:$0xff]
          %v667 = vld [vmem:[#allocation3 + $0x10] sm:$0xff]
          %v668 = vld [vmem:[#allocation3 + $0x18] sm:$0xff]
          %v669 = vmax.f32 %v665, %v666
          %v670 = vmax.f32 %v667, %v668
          %v671 = vmax.f32 %v669, %v670
          %672 = vmax.xlane.f32.xlu0 %v671
          %v673 = vpop.xlane.xlu0 %672
          %v674 = vsub.f32 %v665, %v673
          %v675 = vsub.f32 %v666, %v673
          %v676 = vsub.f32 %v667, %v673
          %v677 = vsub.f32 %v668, %v673
          %v678 = vmul.f32 %v674, 1.442695
          %v679 = vpow.pop %v678
          %v680 = vmul.f32 %v675, 1.442695
          %v681 = vpow.pop %v680
          %v682 = vmul.f32 %v676, 1.442695
          %v683 = vpow.pop %v682
          %v684 = vmul.f32 %v677, 1.442695
          %v685 = vpow.pop %v684
          %v686 = vadd.f32 %v679, %v681
          %v687 = vadd.f32 %v686, %v683
          %v688 = vadd.f32 %v687, %v685
          %689 = vadd.xlane.f32.xlu0 %v688
          %v690 = vpop.xlane.xlu0 %689
          %v691 = vlog2.pop %v690
          %v692 = vmul.f32 %v691, 0.6931472
          %v693 = vadd.f32 %v673, %v692
          %v694 = vlaneseq
          %v695 = vand.u32 %v694, 127
          %v696 = vadd.s32 %v695, 128
          %v697 = vadd.s32 %v695, 256
          %v698 = vadd.s32 %v695, 384
          %v699 = vld [vmem:[%s1] sm:$0xff]
          %700 = vset.pattern.permute.xlu0 0
          %701 = vperm.xlu0 %700, %v699
          %v702 = vpop.permute.xlu0 %701
          %vm703 = vcmp.eq.s32.totalorder %v695, %v702
          %vm704 = vcmp.eq.s32.totalorder %v696, %v702
          %vm705 = vcmp.eq.s32.totalorder %v697, %v702
          %vm706 = vcmp.eq.s32.totalorder %v698, %v702
          %v707 = vsel %vm703, %v665, 0.0
          %v708 = vsel %vm704, %v666, 0.0
          %v709 = vsel %vm705, %v667, 0.0
          %v710 = vsel %vm706, %v668, 0.0
          %v711 = vadd.f32 %v707, %v708
          %v712 = vadd.f32 %v711, %v709
          %v713 = vadd.f32 %v712, %v710
          %714 = vadd.xlane.f32.xlu0 %v713
          %v715 = vpop.xlane.xlu0 %714
          %v716 = vsub.f32 %v693, %v715
          %vm717 = vcmask 7168
          %v718 = vsel %vm717, %v716, 0.0
          %719 = vadd.xlane.f32.xlu0 %v718
          %v720 = vpop.xlane.xlu0 %719
          %v721 = vrot.slane %v720, 4
          %v722 = vadd.f32 %v720, %v721
          %v723 = vrot.slane %v722, 2
          %v724 = vadd.f32 %v722, %v723
          %v725 = vrot.slane %v724, 1
          %v726 = vadd.f32 %v724, %v725
          %s727 = vtos %v726
          %v728 = vrcp.pop 8.0
          %s729 = vtos %v728
          %s730 = smul.f32 %s727, %s729
          %v731 = vstv %s730
          %vm732 = vcmask 0
          %733 = vst.msk [vmem:[#allocation9] sm:$0x1] %vm732, %v731
        $region56: #{simple_model_loss.1} parent=35 // pred_fallthru
          _
        // Predicated region
        $region57: #{simple_model_loss.1} parent=35 // pred_check
          %p734 = pneg %p148
        $region58: #{simple_model_loss.1} parent=35 // pred_check_branch
          %736 = sbr.rel (%p734) target = $region60
        $region59: #{simple_model_loss.1} parent=35 // pred_region
          %s738 = ssub.s32 16, 16
          %739 = vsyncadd [#allocation6], %s738
          %s741 = sshll.u32 [#allocation9], 4
          %s742 = int_to_ptr.vmem [resolvable:$true] %s741
          %744 = dma.vmem_to_hbm [thread:$0]  %s742, 16, %s4, [#allocation6]
        $region60: #{simple_model_loss.1} parent=35 // pred_fallthru
          _
        // Predicated region
        $region61: #{simple_model_loss.1} parent=35 // pred_check
          %p745 = pneg %p148
        $region62: #{simple_model_loss.1} parent=35 // pred_check_branch
          %747 = sbr.rel (%p745) target = $region64
        $region63: #{simple_model_loss.1} parent=35 // pred_region
          %748 = dma.done [#allocation6], 16
        $region64: #{simple_model_loss.1} parent=35 // pred_fallthru
          _
      $region36: #{simple_model_loss.1} parent=5 // pred_fallthru
        _
      %p749 = scmp.le.s32.totalorder 2, %s17
      // Predicated region
      $region65: #{simple_model_loss.1} parent=5 // pred_check
        %p750 = pneg %p749
      $region66: #{simple_model_loss.1} parent=5 // pred_check_branch
        %752 = sbr.rel (%p750) target = $region68
      $region67: #{simple_model_loss.1} parent=5 // pred_region
        %s753 = ssub.s32 %s17, 2
      $region68: #{simple_model_loss.1} parent=5 // pred_fallthru
        _
    $region6: #{simple_model_loss.1} parent=1 // loop_footer
      %s21 = sadd.s32 1, %s17
    $region7: #{simple_model_loss.1} parent=1 // loop_footer_branch
      %16 = sbr.rel target = $region3
    $region8: #{simple_model_loss.1} parent=1 // loop_exit
      _
    %754 = vsyncpa [#allocation5], 1
    %s755 = scalar_lea.sflag [#allocation5], 1
    %756 = vsyncpa %s755, 1
    %757 = vsyncpa [#allocation8], 1
    %s758 = scalar_lea.sflag [#allocation8], 1
    %759 = vsyncpa %s758, 1
    %760 = vsyncpa [#allocation6], 1
    %s761 = scalar_lea.sflag [#allocation6], 1
    %762 = vsyncpa %s761, 1

</llo_original>
